<compile_context>
chip_gen: v7x
topology: tpu7x:2x2x1
jax: 0.10.0
libtpu: 0.0.40
codegen_flags: <defaults>
</compile_context>

<pallas_src>
import jax
import jax.numpy as jnp
from jax.experimental import pallas as pl
from jax.experimental.pallas import tpu as pltpu

_LANE = 128          # vreg lane width
_SUBLANE = 8         # vreg sublane count (f32)
_K_TILE_MAX = 512    # K tile for the first (projection) layer
_MAX_BATCH_TILE = 256  # cap: (256,128) f32 activation already >> vreg file


def _round_up(x, m):
    return (x + m - 1) // m * m


# ---------------------------------------------------------------------------
# Kernel
# ---------------------------------------------------------------------------
def _make_mlp_kernel(num_linears: int):
    """Kernel for the whole Linear/ReLU chain.

    Ref order: x, (w0, b0, ..., w_{L-1}, b_{L-1}), out, acc_scratch.
    Grid = (batch_tiles, k_tiles).  The first matmul is K-tiled and accumulated
    into an f32 VMEM scratch; the remaining (small, resident) layers and the
    lane-dense output store run only on the last K step.
    """

    def kernel(*refs):
        x_ref = refs[0]
        wb_refs = refs[1:1 + 2 * num_linears]
        out_ref = refs[1 + 2 * num_linears]
        acc_ref = refs[2 + 2 * num_linears]

        k = pl.program_id(1)
        nk = pl.num_programs(1)

        @pl.when(k == 0)
        def _init():
            acc_ref[...] = jnp.zeros_like(acc_ref)

        # Projection layer, K-tiled: bf16 x bf16 on the MXU, f32 accumulation.
        acc_ref[...] += jnp.dot(
            x_ref[...], wb_refs[0][...], preferred_element_type=jnp.float32)

        @pl.when(k == nk - 1)
        def _finish():
            # TODO(synk): nn.Dropout is identity in eval mode; no RNG masking.
            h = jnp.maximum(acc_ref[...] + wb_refs[1][...], 0.0)  # bias + ReLU
            for li in range(1, num_linears):
                w = wb_refs[2 * li][...]
                b = wb_refs[2 * li + 1][...]
                h = jnp.dot(h.astype(w.dtype), w,
                            preferred_element_type=jnp.float32) + b
                if li < num_linears - 1:
                    h = jnp.maximum(h, 0.0)
            out_ref[...] = h.astype(out_ref.dtype)  # full (bt, 128) lane-dense store

    return kernel


# ---------------------------------------------------------------------------
# Wrapper
# ---------------------------------------------------------------------------
def full_embedding_mlp(x, weights, biases, *,
                       batch_tile=_MAX_BATCH_TILE, k_tile=_K_TILE_MAX):
    """weights[i]: (d_in_i, d_out_i), biases[i]: (1, d_out_i). Returns (B, 1) f32."""
    # Glue matching the torch forward: squeeze(1) + flatten.
    if x.ndim == 4 and x.shape[1] == 1:
        x = x[:, 0]
    B = x.shape[0]
    x_flat = x.reshape(B, -1)
    d_in = x_flat.shape[1]
    num_linears = len(weights)

    # --- K tiling for the first layer (VMEM-budget-independent of d_in) ----
    if d_in <= k_tile:
        d_in_pad = _round_up(d_in, _LANE)
        tk = d_in_pad
    else:
        d_in_pad = _round_up(d_in, k_tile)
        tk = k_tile
    num_k = d_in_pad // tk

    # --- batch tiling: fill MXU M rows; pad B so every tile is full --------
    bt = min(batch_tile, _round_up(B, _SUBLANE))
    bt = _round_up(bt, _SUBLANE)
    B_pad = _round_up(B, bt)
    num_bt = B_pad // bt
    # NOTE: on v7x (2 TCs) prefer B large enough that num_bt is even.

    # --- pad & cast operands (bf16 weights/activations, f32 biases) --------
    xp = jnp.zeros((B_pad, d_in_pad), jnp.bfloat16)
    xp = xp.at[:B, :d_in].set(x_flat.astype(jnp.bfloat16))

    wp, bp = [], []
    prev = d_in_pad
    for w, b in zip(weights, biases):
        di, do = w.shape
        do_pad = _round_up(do, _LANE)
        w_padded = jnp.zeros((prev, do_pad), jnp.bfloat16)
        w_padded = w_padded.at[:di, :do].set(w.astype(jnp.bfloat16))
        b_padded = jnp.zeros((1, do_pad), jnp.float32)
        b_padded = b_padded.at[:, :do].set(b.astype(jnp.float32))
        wp.append(w_padded)
        bp.append(b_padded)
        prev = do_pad
    d0_pad = wp[0].shape[1]
    out_pad = wp[-1].shape[1]
    out_dim = weights[-1].shape[1]  # == 1

    # --- block specs ---------------------------------------------------------
    in_specs = [pl.BlockSpec((bt, tk), lambda i, k: (i, k))]
    flat_params = [wp[0], bp[0]]
    in_specs.append(pl.BlockSpec((tk, d0_pad), lambda i, k: (k, 0)))
    in_specs.append(pl.BlockSpec(bp[0].shape, lambda i, k: (0, 0)))
    for w, b in zip(wp[1:], bp[1:]):
        # Constant block index -> not re-fetched across grid steps.
        in_specs.append(pl.BlockSpec(w.shape, lambda i, k: (0, 0)))
        in_specs.append(pl.BlockSpec(b.shape, lambda i, k: (0, 0)))
        flat_params.extend([w, b])

    # Lane-dense output block (>= 128 columns); real column 0 sliced below.
    out_specs = pl.BlockSpec((bt, out_pad), lambda i, k: (i, 0))

    # --- explicit VMEM budget (matters most on v7x's 64 MiB/TC) ------------
    def _nbytes(a):
        return a.size * a.dtype.itemsize
    vmem = 2 * (bt * tk * 2)                       # x tile (bf16, double-buffered)
    vmem += 2 * (tk * d0_pad * 2 + _nbytes(bp[0]))  # w0 tile + b0
    for w, b in zip(wp[1:], bp[1:]):
        vmem += 2 * (_nbytes(w) + _nbytes(b))       # resident layer params
    vmem += 2 * (bt * out_pad * 4)                  # output tile (f32)
    vmem += bt * d0_pad * 4                         # accumulator scratch
    vmem_limit = min(max(vmem + (8 << 20), 32 << 20), 64 << 20)

    kernel = _make_mlp_kernel(num_linears)
    out = pl.pallas_call(
        kernel,
        out_shape=jax.ShapeDtypeStruct((B_pad, out_pad), jnp.float32),
        grid_spec=pltpu.PrefetchScalarGridSpec(
            num_scalar_prefetch=0,
            grid=(num_bt, num_k),
            in_specs=in_specs,
            out_specs=out_specs,
            scratch_shapes=[pltpu.VMEM((bt, d0_pad), jnp.float32)],
        ),
        compiler_params=pltpu.CompilerParams(
            dimension_semantics=("parallel", "arbitrary"),
            vmem_limit_bytes=vmem_limit,
        ),
    )(xp, *flat_params)

    return out[:B, :out_dim]


# ---------------------------------------------------------------------------
# Deterministic parameter construction (PyTorch-like uniform init)
# ---------------------------------------------------------------------------
def init_params(key, seq_len, embed_dim, projection_dim, mlp_hidden_dims):
    dims = [seq_len * embed_dim, projection_dim] + list(mlp_hidden_dims) + [1]
    weights, biases = [], []
    for i in range(len(dims) - 1):
        d_in, d_out = dims[i], dims[i + 1]
        key, kw, kb = jax.random.split(key, 3)
        bound = 1.0 / jnp.sqrt(jnp.float32(d_in))
        # stored as (in, out): torch Linear weight (out, in), transposed
        w = jax.random.uniform(kw, (d_in, d_out), jnp.float32, -bound, bound)
        b = jax.random.uniform(kb, (1, d_out), jnp.float32, -bound, bound)
        weights.append(w)
        biases.append(b)
    return weights, biases


def reference_forward(x, weights, biases):
    """Mirrors the kernel's bf16-weight / bf16-activation, f32-accumulate math."""
    if x.ndim == 4 and x.shape[1] == 1:
        x = x[:, 0]
    h = x.reshape(x.shape[0], -1).astype(jnp.float32)
    n = len(weights)
    for i, (w, b) in enumerate(zip(weights, biases)):
        hq = h.astype(jnp.bfloat16).astype(jnp.float32)
        wq = w.astype(jnp.bfloat16).astype(jnp.float32)
        h = jnp.dot(hq, wq, precision=jax.lax.Precision.HIGHEST) + b.astype(jnp.float32)
        if i < n - 1:
            h = jnp.maximum(h, 0.0)
    return h


# ---------------------------------------------------------------------------
if __name__ == "__main__":
    # Small, module-consistent shapes.
    B, S, E = 16, 8, 32            # batch, seq_len, embed_dim
    PROJ = 128
    HIDDEN = [64, 32]
    # mlp_dropout_rates would be len(HIDDEN)+1 = 3 entries; identity in eval.

    key = jax.random.PRNGKey(0)
    key, kx = jax.random.split(key)
    x = jax.random.normal(kx, (B, 1, S, E), jnp.float32)  # (B, 1, S, E)

    weights, biases = init_params(key, S, E, PROJ, HIDDEN)

    out = full_embedding_mlp(x, weights, biases)
    out = jax.block_until_ready(out)

    ref = reference_forward(x, weights, biases)
    assert out.shape == (B, 1), out.shape
    assert jnp.allclose(out, ref, atol=2e-3, rtol=2e-3), (
        "mismatch vs reference, max abs err = %e"
        % float(jnp.max(jnp.abs(out - ref))))

    print("KERNEL_OK")
</pallas_src>

<mosaic_0001>
module attributes {stable_mosaic.version = 11 : i64} {
  func.func @kernel(%arg0: i32, %arg1: i32, %arg2: memref<16x256xbf16, #tpu.memory_space<vmem>>, %arg3: memref<256x128xbf16, #tpu.memory_space<vmem>>, %arg4: memref<1x128xf32, #tpu.memory_space<vmem>>, %arg5: memref<128x128xbf16, #tpu.memory_space<vmem>>, %arg6: memref<1x128xf32, #tpu.memory_space<vmem>>, %arg7: memref<128x128xbf16, #tpu.memory_space<vmem>>, %arg8: memref<1x128xf32, #tpu.memory_space<vmem>>, %arg9: memref<128x128xbf16, #tpu.memory_space<vmem>>, %arg10: memref<1x128xf32, #tpu.memory_space<vmem>>, %arg11: memref<16x128xf32, #tpu.memory_space<vmem>>, %arg12: memref<16x128xf32, #tpu.memory_space<vmem>>) attributes {dimension_semantics = [#tpu.dimension_semantics<parallel>, #tpu.dimension_semantics<arbitrary>], iteration_bounds = array<i64: 1, 1>, scalar_prefetch = 0 : i64, scratch_operands = 1 : i64, tpu.core_type = #tpu.core_type<tc>, window_params = [{transform_indices = @transform_0, window_bounds = array<i64: 16, 256>}, {transform_indices = @transform_1, window_bounds = array<i64: 256, 128>}, {pipeline_mode = #tpu.pipeline_mode<synchronous>, transform_indices = @transform_2, window_bounds = array<i64: 1, 128>}, {pipeline_mode = #tpu.pipeline_mode<synchronous>, transform_indices = @transform_3, window_bounds = array<i64: 128, 128>}, {pipeline_mode = #tpu.pipeline_mode<synchronous>, transform_indices = @transform_4, window_bounds = array<i64: 1, 128>}, {pipeline_mode = #tpu.pipeline_mode<synchronous>, transform_indices = @transform_5, window_bounds = array<i64: 128, 128>}, {pipeline_mode = #tpu.pipeline_mode<synchronous>, transform_indices = @transform_6, window_bounds = array<i64: 1, 128>}, {pipeline_mode = #tpu.pipeline_mode<synchronous>, transform_indices = @transform_7, window_bounds = array<i64: 128, 128>}, {pipeline_mode = #tpu.pipeline_mode<synchronous>, transform_indices = @transform_8, window_bounds = array<i64: 1, 128>}, {transform_indices = @transform_9, window_bounds = array<i64: 16, 128>}]} {
    %c0_i32 = arith.constant 0 : i32
    %0 = arith.cmpi eq, %arg1, %c0_i32 : i32
    %1 = arith.extui %0 : i1 to i32
    %c0_i32_0 = arith.constant 0 : i32
    %2 = arith.cmpi ne, %1, %c0_i32_0 : i32
    scf.if %2 {
      %cst_10 = arith.constant 0.000000e+00 : f32
      %12 = vector.broadcast %cst_10 : f32 to vector<16x128xf32>
      %c0_11 = arith.constant 0 : index
      %c0_12 = arith.constant 0 : index
      %13 = vector.load %arg12[%c0_11, %c0_12] : memref<16x128xf32, #tpu.memory_space<vmem>>, vector<16x128xf32>
      tpu.vector_store %arg12[%c0_11, %c0_12], %12 {strides = array<i32>} : memref<16x128xf32, #tpu.memory_space<vmem>>, vector<16x128xf32>,
    } else {
    }
    %c0 = arith.constant 0 : index
    %c0_1 = arith.constant 0 : index
    %3 = vector.load %arg12[%c0, %c0_1] : memref<16x128xf32, #tpu.memory_space<vmem>>, vector<16x128xf32>
    %c0_2 = arith.constant 0 : index
    %c0_3 = arith.constant 0 : index
    %4 = vector.load %arg2[%c0_2, %c0_3] : memref<16x256xbf16, #tpu.memory_space<vmem>>, vector<16x256xbf16>
    %c0_4 = arith.constant 0 : index
    %c0_5 = arith.constant 0 : index
    %5 = vector.load %arg3[%c0_4, %c0_5] : memref<256x128xbf16, #tpu.memory_space<vmem>>, vector<256x128xbf16>
    %cst = arith.constant dense<0.000000e+00> : vector<16x128xf32>
    %6 = tpu.matmul %4, %5, %cst {dimension_numbers = #tpu.dot_dimension_numbers<[1], [0], [0], [1], [0, 0, 1, 1], [], []>} : vector<16x256xbf16>, vector<256x128xbf16>, vector<16x128xf32> -> vector<16x128xf32>
    %7 = arith.addf %3, %6 : vector<16x128xf32>
    %c0_6 = arith.constant 0 : index
    %c0_7 = arith.constant 0 : index
    %8 = vector.load %arg12[%c0_6, %c0_7] : memref<16x128xf32, #tpu.memory_space<vmem>>, vector<16x128xf32>
    tpu.vector_store %arg12[%c0_6, %c0_7], %7 {strides = array<i32>} : memref<16x128xf32, #tpu.memory_space<vmem>>, vector<16x128xf32>,
    %c0_i32_8 = arith.constant 0 : i32
    %9 = arith.cmpi eq, %arg1, %c0_i32_8 : i32
    %10 = arith.extui %9 : i1 to i32
    %c0_i32_9 = arith.constant 0 : i32
    %11 = arith.cmpi ne, %10, %c0_i32_9 : i32
    scf.if %11 {
      %c0_10 = arith.constant 0 : index
      %c0_11 = arith.constant 0 : index
      %12 = vector.load %arg12[%c0_10, %c0_11] : memref<16x128xf32, #tpu.memory_space<vmem>>, vector<16x128xf32>
      %c0_12 = arith.constant 0 : index
      %c0_13 = arith.constant 0 : index
      %13 = vector.load %arg4[%c0_12, %c0_13] : memref<1x128xf32, #tpu.memory_space<vmem>>, vector<1x128xf32>
      %14 = vector.broadcast %13 : vector<1x128xf32> to vector<16x128xf32>
      %15 = arith.addf %12, %14 : vector<16x128xf32>
      %cst_14 = arith.constant 0.000000e+00 : f32
      %16 = vector.broadcast %cst_14 : f32 to vector<16x128xf32>
      %17 = arith.maximumf %15, %16 : vector<16x128xf32>
      %c0_15 = arith.constant 0 : index
      %c0_16 = arith.constant 0 : index
      %18 = vector.load %arg5[%c0_15, %c0_16] : memref<128x128xbf16, #tpu.memory_space<vmem>>, vector<128x128xbf16>
      %c0_17 = arith.constant 0 : index
      %c0_18 = arith.constant 0 : index
      %19 = vector.load %arg6[%c0_17, %c0_18] : memref<1x128xf32, #tpu.memory_space<vmem>>, vector<1x128xf32>
      %20 = arith.truncf %17 : vector<16x128xf32> to vector<16x128xbf16>
      %cst_19 = arith.constant dense<0.000000e+00> : vector<16x128xf32>
      %21 = tpu.matmul %20, %18, %cst_19 {dimension_numbers = #tpu.dot_dimension_numbers<[1], [0], [0], [1], [0, 0, 1, 1], [], []>} : vector<16x128xbf16>, vector<128x128xbf16>, vector<16x128xf32> -> vector<16x128xf32>
      %22 = vector.broadcast %19 : vector<1x128xf32> to vector<16x128xf32>
      %23 = arith.addf %21, %22 : vector<16x128xf32>
      %cst_20 = arith.constant 0.000000e+00 : f32
      %24 = vector.broadcast %cst_20 : f32 to vector<16x128xf32>
      %25 = arith.maximumf %23, %24 : vector<16x128xf32>
      %c0_21 = arith.constant 0 : index
      %c0_22 = arith.constant 0 : index
      %26 = vector.load %arg7[%c0_21, %c0_22] : memref<128x128xbf16, #tpu.memory_space<vmem>>, vector<128x128xbf16>
      %c0_23 = arith.constant 0 : index
      %c0_24 = arith.constant 0 : index
      %27 = vector.load %arg8[%c0_23, %c0_24] : memref<1x128xf32, #tpu.memory_space<vmem>>, vector<1x128xf32>
      %28 = arith.truncf %25 : vector<16x128xf32> to vector<16x128xbf16>
      %cst_25 = arith.constant dense<0.000000e+00> : vector<16x128xf32>
      %29 = tpu.matmul %28, %26, %cst_25 {dimension_numbers = #tpu.dot_dimension_numbers<[1], [0], [0], [1], [0, 0, 1, 1], [], []>} : vector<16x128xbf16>, vector<128x128xbf16>, vector<16x128xf32> -> vector<16x128xf32>
      %30 = vector.broadcast %27 : vector<1x128xf32> to vector<16x128xf32>
      %31 = arith.addf %29, %30 : vector<16x128xf32>
      %cst_26 = arith.constant 0.000000e+00 : f32
      %32 = vector.broadcast %cst_26 : f32 to vector<16x128xf32>
      %33 = arith.maximumf %31, %32 : vector<16x128xf32>
      %c0_27 = arith.constant 0 : index
      %c0_28 = arith.constant 0 : index
      %34 = vector.load %arg9[%c0_27, %c0_28] : memref<128x128xbf16, #tpu.memory_space<vmem>>, vector<128x128xbf16>
      %c0_29 = arith.constant 0 : index
      %c0_30 = arith.constant 0 : index
      %35 = vector.load %arg10[%c0_29, %c0_30] : memref<1x128xf32, #tpu.memory_space<vmem>>, vector<1x128xf32>
      %36 = arith.truncf %33 : vector<16x128xf32> to vector<16x128xbf16>
      %cst_31 = arith.constant dense<0.000000e+00> : vector<16x128xf32>
      %37 = tpu.matmul %36, %34, %cst_31 {dimension_numbers = #tpu.dot_dimension_numbers<[1], [0], [0], [1], [0, 0, 1, 1], [], []>} : vector<16x128xbf16>, vector<128x128xbf16>, vector<16x128xf32> -> vector<16x128xf32>
      %38 = vector.broadcast %35 : vector<1x128xf32> to vector<16x128xf32>
      %39 = arith.addf %37, %38 : vector<16x128xf32>
      %c0_32 = arith.constant 0 : index
      %c0_33 = arith.constant 0 : index
      %40 = vector.load %arg11[%c0_32, %c0_33] : memref<16x128xf32, #tpu.memory_space<vmem>>, vector<16x128xf32>
      tpu.vector_store %arg11[%c0_32, %c0_33], %39 {strides = array<i32>} : memref<16x128xf32, #tpu.memory_space<vmem>>, vector<16x128xf32>,
    } else {
    }
    return
  }
  func.func @transform_0(%arg0: i32, %arg1: i32) -> (i32, i32) {
    %c0_i32 = arith.constant 0 : i32
    return %arg0, %arg1 : i32, i32
  }
  func.func @transform_1(%arg0: i32, %arg1: i32) -> (i32, i32) {
    %c0_i32 = arith.constant 0 : i32
    %c0_i32_0 = arith.constant 0 : i32
    return %arg1, %c0_i32 : i32, i32
  }
  func.func @transform_2(%arg0: i32, %arg1: i32) -> (i32, i32) {
    %c0_i32 = arith.constant 0 : i32
    %c0_i32_0 = arith.constant 0 : i32
    %c0_i32_1 = arith.constant 0 : i32
    return %c0_i32, %c0_i32_0 : i32, i32
  }
  func.func @transform_3(%arg0: i32, %arg1: i32) -> (i32, i32) {
    %c0_i32 = arith.constant 0 : i32
    %c0_i32_0 = arith.constant 0 : i32
    %c0_i32_1 = arith.constant 0 : i32
    return %c0_i32, %c0_i32_0 : i32, i32
  }
  func.func @transform_4(%arg0: i32, %arg1: i32) -> (i32, i32) {
    %c0_i32 = arith.constant 0 : i32
    %c0_i32_0 = arith.constant 0 : i32
    %c0_i32_1 = arith.constant 0 : i32
    return %c0_i32, %c0_i32_0 : i32, i32
  }
  func.func @transform_5(%arg0: i32, %arg1: i32) -> (i32, i32) {
    %c0_i32 = arith.constant 0 : i32
    %c0_i32_0 = arith.constant 0 : i32
    %c0_i32_1 = arith.constant 0 : i32
    return %c0_i32, %c0_i32_0 : i32, i32
  }
  func.func @transform_6(%arg0: i32, %arg1: i32) -> (i32, i32) {
    %c0_i32 = arith.constant 0 : i32
    %c0_i32_0 = arith.constant 0 : i32
    %c0_i32_1 = arith.constant 0 : i32
    return %c0_i32, %c0_i32_0 : i32, i32
  }
  func.func @transform_7(%arg0: i32, %arg1: i32) -> (i32, i32) {
    %c0_i32 = arith.constant 0 : i32
    %c0_i32_0 = arith.constant 0 : i32
    %c0_i32_1 = arith.constant 0 : i32
    return %c0_i32, %c0_i32_0 : i32, i32
  }
  func.func @transform_8(%arg0: i32, %arg1: i32) -> (i32, i32) {
    %c0_i32 = arith.constant 0 : i32
    %c0_i32_0 = arith.constant 0 : i32
    %c0_i32_1 = arith.constant 0 : i32
    return %c0_i32, %c0_i32_0 : i32, i32
  }
  func.func @transform_9(%arg0: i32, %arg1: i32) -> (i32, i32) {
    %c0_i32 = arith.constant 0 : i32
    %c0_i32_0 = arith.constant 0 : i32
    return %arg0, %c0_i32 : i32, i32
  }
}

</mosaic_0001>

<llo_original>
// kernel: tpu_custom_call.1
$region0: #{tpu_custom_call.1}
  #allocation0 [shape = 'u32[]', space=smem, size = 0x4, offset = 0x4, fixed_abs, tag = 'smem constant byte address 0x4 - core index']
  #allocation1 [shape = 'u32[144,128]{1,0:T(1,128)}', space=vmem, size = 0x12000, scoped, tag = 'internal scratch']
  #allocation2 [shape = 'f32[16,128]{1,0:T(8,128)}', space=vmem, size = 0x2000, scoped, tag = 'scratch operand']
  %s0 = inlined_call_operand.hbm [shape: bf16[16,256], index: 0, kind: input, shape index: {}]
  %s1 = inlined_call_operand.hbm [shape: bf16[256,128], index: 1, kind: input, shape index: {}]
  %s2 = inlined_call_operand.vmem [shape: f32[1,128], index: 2, kind: input, shape index: {}]
  %s3 = inlined_call_operand.hbm [shape: bf16[128,128], index: 3, kind: input, shape index: {}]
  %s4 = inlined_call_operand.vmem [shape: f32[1,128], index: 4, kind: input, shape index: {}]
  %s5 = inlined_call_operand.hbm [shape: bf16[128,128], index: 5, kind: input, shape index: {}]
  %s6 = inlined_call_operand.vmem [shape: f32[1,128], index: 6, kind: input, shape index: {}]
  %s7 = inlined_call_operand.hbm [shape: bf16[128,128], index: 7, kind: input, shape index: {}]
  %s8 = inlined_call_operand.vmem [shape: f32[1,128], index: 8, kind: input, shape index: {}]
  %s9 = inlined_call_operand.hbm [shape: f32[16,128], index: 9, kind: output, shape index: {}]
  %s10 = sld [smem:[#allocation0]]
  $region74: #{tpu_custom_call.1} parent=0
    _
  %s12 = ssub.s32 1, %s10
  %s13 = scalar_select 0, %s12, %s10
  $region1: #{tpu_custom_call.1} parent=0
    #allocation3 [shape = 'u8[8192]{0}', space=vmem, size = 0x2000, scoped, tag = 'input window, operand 0, single buffered']
    #allocation4 [shape = 's32[1]{0}', space=sflag, size = 0x4, scoped, tag = 'scoped memory for tpu_custom_call.1']
    #allocation5 [shape = 's32[1]{0}', space=sflag, size = 0x4, scoped, tag = 'scoped memory for tpu_custom_call.1']
    #allocation6 [shape = 'u8[65536]{0}', space=vmem, size = 0x10000, scoped, tag = 'input window, operand 1, single buffered']
    #allocation7 [shape = 's32[1]{0}', space=sflag, size = 0x4, scoped, tag = 'scoped memory for tpu_custom_call.1']
    #allocation8 [shape = 'u8[32768]{0}', space=vmem, size = 0x8000, scoped, tag = 'input window, operand 3, single buffered']
    #allocation9 [shape = 'u8[32768]{0}', space=vmem, size = 0x8000, scoped, tag = 'input window, operand 5, single buffered']
    #allocation10 [shape = 's32[1]{0}', space=sflag, size = 0x4, scoped, tag = 'scoped memory for tpu_custom_call.1']
    #allocation11 [shape = 'u8[32768]{0}', space=vmem, size = 0x8000, scoped, tag = 'input window, operand 7, single buffered']
    #allocation12 [shape = 'u8[8192]{0}', space=vmem, size = 0x2000, scoped, tag = 'output window, operand 0, single buffered']
    %14 = vsyncpa [#allocation4], 0
    %15 = vsyncpa [#allocation7], 0
    %16 = vsyncpa [#allocation10], 0
    %17 = vsyncpa [#allocation5], 0
    // Predicated region
    $region2: #{tpu_custom_call.1} parent=1 // pred_check
      _
    $region3: #{tpu_custom_call.1} parent=1 // pred_check_branch
      %19 = sbr.rel (0) target = $region5
    $region4: #{tpu_custom_call.1} parent=1 // pred_region
      %s21 = ssub.s32 256, 256
      %22 = vsyncadd [#allocation4], %s21
      %s23 = sshll.u32 [#allocation3], 4
      %s24 = int_to_ptr.vmem [resolvable:$true] %s23
      %29 = dma.hbm_to_vmem [thread:$0]  %s0, 256, %s24, [#allocation4], 128, 128, 8
    $region5: #{tpu_custom_call.1} parent=1 // pred_fallthru
      _
    // Predicated region
    $region6: #{tpu_custom_call.1} parent=1 // pred_check
      _
    $region7: #{tpu_custom_call.1} parent=1 // pred_check_branch
      %31 = sbr.rel (0) target = $region9
    $region8: #{tpu_custom_call.1} parent=1 // pred_region
      %s33 = ssub.s32 2048, 2048
      %34 = vsyncadd [#allocation7], %s33
      %s35 = sshll.u32 [#allocation6], 4
      %s36 = int_to_ptr.vmem [resolvable:$true] %s35
      %41 = dma.hbm_to_vmem [thread:$0]  %s1, 2048, %s36, [#allocation7], 64, 64, 4
    $region9: #{tpu_custom_call.1} parent=1 // pred_fallthru
      _
    // Predicated region
    $region10: #{tpu_custom_call.1} parent=1 // pred_check
      _
    $region11: #{tpu_custom_call.1} parent=1 // pred_check_branch
      %43 = sbr.rel (0) target = $region13
    $region12: #{tpu_custom_call.1} parent=1 // pred_region
      _
    $region13: #{tpu_custom_call.1} parent=1 // pred_fallthru
      _
    // Predicated region
    $region14: #{tpu_custom_call.1} parent=1 // pred_check
      _
    $region15: #{tpu_custom_call.1} parent=1 // pred_check_branch
      %45 = sbr.rel (0) target = $region17
    $region16: #{tpu_custom_call.1} parent=1 // pred_region
      %s47 = ssub.s32 1024, 1024
      %48 = vsyncadd [#allocation7], %s47
      %s49 = sshll.u32 [#allocation8], 4
      %s50 = int_to_ptr.vmem [resolvable:$true] %s49
      %55 = dma.hbm_to_vmem [thread:$0]  %s3, 1024, %s50, [#allocation7], 64, 64, 4
    $region17: #{tpu_custom_call.1} parent=1 // pred_fallthru
      _
    // Predicated region
    $region18: #{tpu_custom_call.1} parent=1 // pred_check
      _
    $region19: #{tpu_custom_call.1} parent=1 // pred_check_branch
      %57 = sbr.rel (0) target = $region21
    $region20: #{tpu_custom_call.1} parent=1 // pred_region
      _
    $region21: #{tpu_custom_call.1} parent=1 // pred_fallthru
      _
    // Predicated region
    $region22: #{tpu_custom_call.1} parent=1 // pred_check
      _
    $region23: #{tpu_custom_call.1} parent=1 // pred_check_branch
      %59 = sbr.rel (0) target = $region25
    $region24: #{tpu_custom_call.1} parent=1 // pred_region
      %s61 = ssub.s32 1024, 1024
      %62 = vsyncadd [#allocation10], %s61
      %s63 = sshll.u32 [#allocation9], 4
      %s64 = int_to_ptr.vmem [resolvable:$true] %s63
      %69 = dma.hbm_to_vmem [thread:$0]  %s5, 1024, %s64, [#allocation10], 64, 64, 4
    $region25: #{tpu_custom_call.1} parent=1 // pred_fallthru
      _
    // Predicated region
    $region26: #{tpu_custom_call.1} parent=1 // pred_check
      _
    $region27: #{tpu_custom_call.1} parent=1 // pred_check_branch
      %71 = sbr.rel (0) target = $region29
    $region28: #{tpu_custom_call.1} parent=1 // pred_region
      _
    $region29: #{tpu_custom_call.1} parent=1 // pred_fallthru
      _
    // Predicated region
    $region30: #{tpu_custom_call.1} parent=1 // pred_check
      _
    $region31: #{tpu_custom_call.1} parent=1 // pred_check_branch
      %73 = sbr.rel (0) target = $region33
    $region32: #{tpu_custom_call.1} parent=1 // pred_region
      %s75 = ssub.s32 1024, 1024
      %76 = vsyncadd [#allocation10], %s75
      %s77 = sshll.u32 [#allocation11], 4
      %s78 = int_to_ptr.vmem [resolvable:$true] %s77
      %83 = dma.hbm_to_vmem [thread:$0]  %s7, 1024, %s78, [#allocation10], 64, 64, 4
    $region33: #{tpu_custom_call.1} parent=1 // pred_fallthru
      _
    // Predicated region
    $region34: #{tpu_custom_call.1} parent=1 // pred_check
      _
    $region35: #{tpu_custom_call.1} parent=1 // pred_check_branch
      %85 = sbr.rel (0) target = $region37
    $region36: #{tpu_custom_call.1} parent=1 // pred_region
      _
    $region37: #{tpu_custom_call.1} parent=1 // pred_fallthru
      _
    // Predicated region
    $region38: #{tpu_custom_call.1} parent=1 // pred_check
      _
    $region39: #{tpu_custom_call.1} parent=1 // pred_check_branch
      %87 = sbr.rel (0) target = $region41
    $region40: #{tpu_custom_call.1} parent=1 // pred_region
      %88 = dma.done [#allocation4], 256
    $region41: #{tpu_custom_call.1} parent=1 // pred_fallthru
      _
    // Predicated region
    $region42: #{tpu_custom_call.1} parent=1 // pred_check
      _
    $region43: #{tpu_custom_call.1} parent=1 // pred_check_branch
      %90 = sbr.rel (0) target = $region45
    $region44: #{tpu_custom_call.1} parent=1 // pred_region
      %91 = dma.done [#allocation7], 2048
    $region45: #{tpu_custom_call.1} parent=1 // pred_fallthru
      _
    // Predicated region
    $region46: #{tpu_custom_call.1} parent=1 // pred_check
      _
    $region47: #{tpu_custom_call.1} parent=1 // pred_check_branch
      %93 = sbr.rel (0) target = $region49
    $region48: #{tpu_custom_call.1} parent=1 // pred_region
      %94 = dma.done [#allocation7], 1024
    $region49: #{tpu_custom_call.1} parent=1 // pred_fallthru
      _
    // Predicated region
    $region50: #{tpu_custom_call.1} parent=1 // pred_check
      _
    $region51: #{tpu_custom_call.1} parent=1 // pred_check_branch
      %96 = sbr.rel (0) target = $region53
    $region52: #{tpu_custom_call.1} parent=1 // pred_region
      %97 = dma.done [#allocation10], 1024
    $region53: #{tpu_custom_call.1} parent=1 // pred_fallthru
      _
    // Predicated region
    $region54: #{tpu_custom_call.1} parent=1 // pred_check
      _
    $region55: #{tpu_custom_call.1} parent=1 // pred_check_branch
      %99 = sbr.rel (0) target = $region57
    $region56: #{tpu_custom_call.1} parent=1 // pred_region
      %100 = dma.done [#allocation10], 1024
    $region57: #{tpu_custom_call.1} parent=1 // pred_fallthru
      _
    %p102 = scmp.eq.s32.totalorder 0, 0
    // Predicated region
    $region58: #{tpu_custom_call.1} parent=1 // pred_check
      %p103 = pneg %p102
    $region59: #{tpu_custom_call.1} parent=1 // pred_check_branch
      %105 = sbr.rel (%p103) target = $region61
    $region60: #{tpu_custom_call.1} parent=1 // pred_region
      %106 = vst [vmem:[#allocation2] sm:$0xff] 0.0
      %107 = vst [vmem:[#allocation2 + $0x8] sm:$0xff] 0.0
    $region61: #{tpu_custom_call.1} parent=1 // pred_fallthru
      _
    %v108 = vld [vmem:[#allocation2] sm:$0xff]
    %v109 = vld [vmem:[#allocation2 + $0x8] sm:$0xff]
    %v110 = vld [vmem:[#allocation3] sm:$0xff]
    %v111 = vld [vmem:[#allocation3 + $0x8] sm:$0xff]
    %v112 = vld [vmem:[#allocation6] sm:$0xf]
    %v113 = vld [vmem:[#allocation6 + $0x4] sm:$0xf]
    %v114 = vld [vmem:[#allocation6 + $0x8] sm:$0xf]
    %v115 = vld [vmem:[#allocation6 + $0xc] sm:$0xf]
    %v116 = vld [vmem:[#allocation6 + $0x10] sm:$0xf]
    %v117 = vld [vmem:[#allocation6 + $0x14] sm:$0xf]
    %v118 = vld [vmem:[#allocation6 + $0x18] sm:$0xf]
    %v119 = vld [vmem:[#allocation6 + $0x1c] sm:$0xf]
    %v120 = vld [vmem:[#allocation6 + $0x20] sm:$0xf]
    %v121 = vld [vmem:[#allocation6 + $0x24] sm:$0xf]
    %v122 = vld [vmem:[#allocation6 + $0x28] sm:$0xf]
    %v123 = vld [vmem:[#allocation6 + $0x2c] sm:$0xf]
    %v124 = vld [vmem:[#allocation6 + $0x30] sm:$0xf]
    %v125 = vld [vmem:[#allocation6 + $0x34] sm:$0xf]
    %v126 = vld [vmem:[#allocation6 + $0x38] sm:$0xf]
    %v127 = vld [vmem:[#allocation6 + $0x3c] sm:$0xf]
    %v128 = vld [vmem:[#allocation6 + $0x40] sm:$0xf]
    %v129 = vld [vmem:[#allocation6 + $0x44] sm:$0xf]
    %v130 = vld [vmem:[#allocation6 + $0x48] sm:$0xf]
    %v131 = vld [vmem:[#allocation6 + $0x4c] sm:$0xf]
    %v132 = vld [vmem:[#allocation6 + $0x50] sm:$0xf]
    %v133 = vld [vmem:[#allocation6 + $0x54] sm:$0xf]
    %v134 = vld [vmem:[#allocation6 + $0x58] sm:$0xf]
    %v135 = vld [vmem:[#allocation6 + $0x5c] sm:$0xf]
    %v136 = vld [vmem:[#allocation6 + $0x60] sm:$0xf]
    %v137 = vld [vmem:[#allocation6 + $0x64] sm:$0xf]
    %v138 = vld [vmem:[#allocation6 + $0x68] sm:$0xf]
    %v139 = vld [vmem:[#allocation6 + $0x6c] sm:$0xf]
    %v140 = vld [vmem:[#allocation6 + $0x70] sm:$0xf]
    %v141 = vld [vmem:[#allocation6 + $0x74] sm:$0xf]
    %v142 = vld [vmem:[#allocation6 + $0x78] sm:$0xf]
    %v143 = vld [vmem:[#allocation6 + $0x7c] sm:$0xf]
    %v146 = vunpack.c.l.b16 %v110
    %v147 = vunpack.c.h.b16 %v110
    %v148 = vunpack.c.l.b16 %v111
    %v149 = vunpack.c.h.b16 %v111
    %v150 = vpack.c.b16 %v148, %v146
    %v151 = vpack.c.b16 %v149, %v147
    %v186 = vunpack.c.l.b16 %v112
    %v187 = vunpack.c.l.b16 %v113
    %v188 = vunpack.c.l.b16 %v114
    %v189 = vunpack.c.l.b16 %v115
    %v190 = vunpack.c.l.b16 %v116
    %v191 = vunpack.c.l.b16 %v117
    %v192 = vunpack.c.l.b16 %v118
    %v193 = vunpack.c.l.b16 %v119
    %v194 = vunpack.c.l.b16 %v120
    %v195 = vunpack.c.l.b16 %v121
    %v196 = vunpack.c.l.b16 %v122
    %v197 = vunpack.c.l.b16 %v123
    %v198 = vunpack.c.l.b16 %v124
    %v199 = vunpack.c.l.b16 %v125
    %v200 = vunpack.c.l.b16 %v126
    %v201 = vunpack.c.l.b16 %v127
    %v202 = vunpack.c.l.b16 %v128
    %v203 = vunpack.c.l.b16 %v129
    %v204 = vunpack.c.l.b16 %v130
    %v205 = vunpack.c.l.b16 %v131
    %v206 = vunpack.c.l.b16 %v132
    %v207 = vunpack.c.l.b16 %v133
    %v208 = vunpack.c.l.b16 %v134
    %v209 = vunpack.c.l.b16 %v135
    %v210 = vunpack.c.l.b16 %v136
    %v211 = vunpack.c.l.b16 %v137
    %v212 = vunpack.c.l.b16 %v138
    %v213 = vunpack.c.l.b16 %v139
    %v214 = vunpack.c.l.b16 %v140
    %v215 = vunpack.c.l.b16 %v141
    %v216 = vunpack.c.l.b16 %v142
    %v217 = vunpack.c.l.b16 %v143
    %v218 = vpack.c.b16 %v187, %v186
    %v219 = vpack.c.b16 %v189, %v188
    %v220 = vpack.c.b16 %v191, %v190
    %v221 = vpack.c.b16 %v193, %v192
    %v222 = vpack.c.b16 %v195, %v194
    %v223 = vpack.c.b16 %v197, %v196
    %v224 = vpack.c.b16 %v199, %v198
    %v225 = vpack.c.b16 %v201, %v200
    %v226 = vpack.c.b16 %v203, %v202
    %v227 = vpack.c.b16 %v205, %v204
    %v228 = vpack.c.b16 %v207, %v206
    %v229 = vpack.c.b16 %v209, %v208
    %v230 = vpack.c.b16 %v211, %v210
    %v231 = vpack.c.b16 %v213, %v212
    %v232 = vpack.c.b16 %v215, %v214
    %v233 = vpack.c.b16 %v217, %v216
    %250 = vmatprep.subr.bf16.mxu0 0
    %251 = vmatpush1.bf16.msra.mxu0 %v218
    %252 = vmatprep.subr.bf16.mxu0 0
    %253 = vmatpush1.bf16.msra.mxu0 %v219
    %254 = vmatprep.subr.bf16.mxu0 0
    %255 = vmatpush1.bf16.msra.mxu0 %v220
    %256 = vmatprep.subr.bf16.mxu0 0
    %257 = vmatpush1.bf16.msra.mxu0 %v221
    %258 = vmatprep.subr.bf16.mxu0 0
    %259 = vmatpush1.bf16.msra.mxu0 %v222
    %260 = vmatprep.subr.bf16.mxu0 0
    %261 = vmatpush1.bf16.msra.mxu0 %v223
    %262 = vmatprep.subr.bf16.mxu0 0
    %263 = vmatpush1.bf16.msra.mxu0 %v224
    %264 = vmatprep.subr.bf16.mxu0 0
    %265 = vmatpush1.bf16.msra.mxu0 %v225
    %266 = vmatprep.subr.bf16.mxu0 0
    %267 = vmatpush1.bf16.msra.mxu0 %v226
    %268 = vmatprep.subr.bf16.mxu0 0
    %269 = vmatpush1.bf16.msra.mxu0 %v227
    %270 = vmatprep.subr.bf16.mxu0 0
    %271 = vmatpush1.bf16.msra.mxu0 %v228
    %272 = vmatprep.subr.bf16.mxu0 0
    %273 = vmatpush1.bf16.msra.mxu0 %v229
    %274 = vmatprep.subr.bf16.mxu0 0
    %275 = vmatpush1.bf16.msra.mxu0 %v230
    %276 = vmatprep.subr.bf16.mxu0 0
    %277 = vmatpush1.bf16.msra.mxu0 %v231
    %278 = vmatprep.subr.bf16.mxu0 0
    %279 = vmatpush1.bf16.msra.mxu0 %v232
    %280 = vmatprep.subr.bf16.mxu0 0
    %281 = vmatpush1.bf16.msra.mxu0 %v233
    %282 = vmatprep.mubr.bf16.mxu0 %v151
    %283 = vmatmul.mubr.bf16.gmra.mrb[0].mxu0 %v150
    %v284 = vpop.f32.mrb[0].mxu0
    %v285 = vadd.f32 0.0, %v284
    %v286 = vpop.f32.mrb[0].mxu0
    %v287 = vpop.f32.mrb[0].mxu0
    %v288 = vadd.f32 0.0, %v287
    %v289 = vpop.f32.mrb[0].mxu0
    %290 = vdwg.mxu0
    %v291 = vadd.f32 %v108, %v285
    %v292 = vadd.f32 %v109, %v288
    %293 = vst [vmem:[#allocation2] sm:$0xff] %v291
    %294 = vst [vmem:[#allocation2 + $0x8] sm:$0xff] %v292
    // Predicated region
    $region62: #{tpu_custom_call.1} parent=1 // pred_check
      %p295 = pneg %p102
    $region63: #{tpu_custom_call.1} parent=1 // pred_check_branch
      %297 = sbr.rel (%p295) target = $region65
    $region64: #{tpu_custom_call.1} parent=1 // pred_region
      %v298 = vld [vmem:[#allocation2] sm:$0xff]
      %v299 = vld [vmem:[#allocation2 + $0x8] sm:$0xff]
      %v300 = vld [vmem:[%s2] sm:$0x1]
      %v302 = vlaneseq
      %v303 = vshrl.u32 %v302, 7
      %v304 = vsub.s32 0, %v303
      %v305 = vrot.slane %v300, %v304
      %v307 = vadd.f32 %v298, %v305
      %v308 = vadd.f32 %v299, %v305
      %v309 = vmax.f32 %v307, 0.0
      %v310 = vmax.f32 %v308, 0.0
      %v311 = vld [vmem:[#allocation8] sm:$0xf]
      %v312 = vld [vmem:[#allocation8 + $0x4] sm:$0xf]
      %v313 = vld [vmem:[#allocation8 + $0x8] sm:$0xf]
      %v314 = vld [vmem:[#allocation8 + $0xc] sm:$0xf]
      %v315 = vld [vmem:[#allocation8 + $0x10] sm:$0xf]
      %v316 = vld [vmem:[#allocation8 + $0x14] sm:$0xf]
      %v317 = vld [vmem:[#allocation8 + $0x18] sm:$0xf]
      %v318 = vld [vmem:[#allocation8 + $0x1c] sm:$0xf]
      %v319 = vld [vmem:[#allocation8 + $0x20] sm:$0xf]
      %v320 = vld [vmem:[#allocation8 + $0x24] sm:$0xf]
      %v321 = vld [vmem:[#allocation8 + $0x28] sm:$0xf]
      %v322 = vld [vmem:[#allocation8 + $0x2c] sm:$0xf]
      %v323 = vld [vmem:[#allocation8 + $0x30] sm:$0xf]
      %v324 = vld [vmem:[#allocation8 + $0x34] sm:$0xf]
      %v325 = vld [vmem:[#allocation8 + $0x38] sm:$0xf]
      %v326 = vld [vmem:[#allocation8 + $0x3c] sm:$0xf]
      %v327 = vld [vmem:[%s4] sm:$0x1]
      %v328 = vpack.c.bf16 %v310, %v309
      %v330 = vlaneseq
      %v331 = vshrl.u32 %v330, 7
      %v332 = vsub.s32 0, %v331
      %v333 = vrot.slane %v327, %v332
      %v351 = vunpack.c.l.b16 %v311
      %v352 = vunpack.c.l.b16 %v312
      %v353 = vunpack.c.l.b16 %v313
      %v354 = vunpack.c.l.b16 %v314
      %v355 = vunpack.c.l.b16 %v315
      %v356 = vunpack.c.l.b16 %v316
      %v357 = vunpack.c.l.b16 %v317
      %v358 = vunpack.c.l.b16 %v318
      %v359 = vunpack.c.l.b16 %v319
      %v360 = vunpack.c.l.b16 %v320
      %v361 = vunpack.c.l.b16 %v321
      %v362 = vunpack.c.l.b16 %v322
      %v363 = vunpack.c.l.b16 %v323
      %v364 = vunpack.c.l.b16 %v324
      %v365 = vunpack.c.l.b16 %v325
      %v366 = vunpack.c.l.b16 %v326
      %v367 = vpack.c.b16 %v352, %v351
      %v368 = vpack.c.b16 %v354, %v353
      %v369 = vpack.c.b16 %v356, %v355
      %v370 = vpack.c.b16 %v358, %v357
      %v371 = vpack.c.b16 %v360, %v359
      %v372 = vpack.c.b16 %v362, %v361
      %v373 = vpack.c.b16 %v364, %v363
      %v374 = vpack.c.b16 %v366, %v365
      %383 = vmatprep.subr.bf16.mxu0 0
      %384 = vmatpush1.bf16.msra.mxu0 %v367
      %385 = vmatprep.subr.bf16.mxu0 0
      %386 = vmatpush1.bf16.msra.mxu0 %v368
      %387 = vmatprep.subr.bf16.mxu0 0
      %388 = vmatpush1.bf16.msra.mxu0 %v369
      %389 = vmatprep.subr.bf16.mxu0 0
      %390 = vmatpush1.bf16.msra.mxu0 %v370
      %391 = vmatprep.subr.bf16.mxu0 0
      %392 = vmatpush1.bf16.msra.mxu0 %v371
      %393 = vmatprep.subr.bf16.mxu0 0
      %394 = vmatpush1.bf16.msra.mxu0 %v372
      %395 = vmatprep.subr.bf16.mxu0 0
      %396 = vmatpush1.bf16.msra.mxu0 %v373
      %397 = vmatprep.subr.bf16.mxu0 0
      %398 = vmatpush1.bf16.msra.mxu0 %v374
      %399 = vmatprep.subr.bf16.mxu0 0
      %400 = vmatpush1.bf16.msra.mxu0 0
      %401 = vmatprep.subr.bf16.mxu0 0
      %402 = vmatpush1.bf16.msra.mxu0 0
      %403 = vmatprep.subr.bf16.mxu0 0
      %404 = vmatpush1.bf16.msra.mxu0 0
      %405 = vmatprep.subr.bf16.mxu0 0
      %406 = vmatpush1.bf16.msra.mxu0 0
      %407 = vmatprep.subr.bf16.mxu0 0
      %408 = vmatpush1.bf16.msra.mxu0 0
      %409 = vmatprep.subr.bf16.mxu0 0
      %410 = vmatpush1.bf16.msra.mxu0 0
      %411 = vmatprep.subr.bf16.mxu0 0
      %412 = vmatpush1.bf16.msra.mxu0 0
      %413 = vmatprep.subr.bf16.mxu0 0
      %414 = vmatpush1.bf16.msra.mxu0 0
      %415 = vmatprep.mubr.bf16.mxu0 0
      %416 = vmatmul.mubr.bf16.gmra.mrb[0].mxu0 %v328
      %v417 = vpop.f32.mrb[0].mxu0
      %v418 = vadd.f32 %v333, %v417
      %v419 = vpop.f32.mrb[0].mxu0
      %v420 = vpop.f32.mrb[0].mxu0
      %v421 = vadd.f32 %v333, %v420
      %v422 = vpop.f32.mrb[0].mxu0
      %423 = vdwg.mxu0
      %v424 = vmax.f32 %v418, 0.0
      %v425 = vmax.f32 %v421, 0.0
      %v426 = vld [vmem:[#allocation9] sm:$0xf]
      %v427 = vld [vmem:[#allocation9 + $0x4] sm:$0xf]
      %v428 = vld [vmem:[#allocation9 + $0x8] sm:$0xf]
      %v429 = vld [vmem:[#allocation9 + $0xc] sm:$0xf]
      %v430 = vld [vmem:[#allocation9 + $0x10] sm:$0xf]
      %v431 = vld [vmem:[#allocation9 + $0x14] sm:$0xf]
      %v432 = vld [vmem:[#allocation9 + $0x18] sm:$0xf]
      %v433 = vld [vmem:[#allocation9 + $0x1c] sm:$0xf]
      %v434 = vld [vmem:[#allocation9 + $0x20] sm:$0xf]
      %v435 = vld [vmem:[#allocation9 + $0x24] sm:$0xf]
      %v436 = vld [vmem:[#allocation9 + $0x28] sm:$0xf]
      %v437 = vld [vmem:[#allocation9 + $0x2c] sm:$0xf]
      %v438 = vld [vmem:[#allocation9 + $0x30] sm:$0xf]
      %v439 = vld [vmem:[#allocation9 + $0x34] sm:$0xf]
      %v440 = vld [vmem:[#allocation9 + $0x38] sm:$0xf]
      %v441 = vld [vmem:[#allocation9 + $0x3c] sm:$0xf]
      %v442 = vld [vmem:[%s6] sm:$0x1]
      %v443 = vpack.c.bf16 %v425, %v424
      %v445 = vlaneseq
      %v446 = vshrl.u32 %v445, 7
      %v447 = vsub.s32 0, %v446
      %v448 = vrot.slane %v442, %v447
      %v466 = vunpack.c.l.b16 %v426
      %v467 = vunpack.c.l.b16 %v427
      %v468 = vunpack.c.l.b16 %v428
      %v469 = vunpack.c.l.b16 %v429
      %v470 = vunpack.c.l.b16 %v430
      %v471 = vunpack.c.l.b16 %v431
      %v472 = vunpack.c.l.b16 %v432
      %v473 = vunpack.c.l.b16 %v433
      %v474 = vunpack.c.l.b16 %v434
      %v475 = vunpack.c.l.b16 %v435
      %v476 = vunpack.c.l.b16 %v436
      %v477 = vunpack.c.l.b16 %v437
      %v478 = vunpack.c.l.b16 %v438
      %v479 = vunpack.c.l.b16 %v439
      %v480 = vunpack.c.l.b16 %v440
      %v481 = vunpack.c.l.b16 %v441
      %v482 = vpack.c.b16 %v467, %v466
      %v483 = vpack.c.b16 %v469, %v468
      %v484 = vpack.c.b16 %v471, %v470
      %v485 = vpack.c.b16 %v473, %v472
      %v486 = vpack.c.b16 %v475, %v474
      %v487 = vpack.c.b16 %v477, %v476
      %v488 = vpack.c.b16 %v479, %v478
      %v489 = vpack.c.b16 %v481, %v480
      %498 = vmatprep.subr.bf16.mxu0 0
      %499 = vmatpush1.bf16.msra.mxu0 %v482
      %500 = vmatprep.subr.bf16.mxu0 0
      %501 = vmatpush1.bf16.msra.mxu0 %v483
      %502 = vmatprep.subr.bf16.mxu0 0
      %503 = vmatpush1.bf16.msra.mxu0 %v484
      %504 = vmatprep.subr.bf16.mxu0 0
      %505 = vmatpush1.bf16.msra.mxu0 %v485
      %506 = vmatprep.subr.bf16.mxu0 0
      %507 = vmatpush1.bf16.msra.mxu0 %v486
      %508 = vmatprep.subr.bf16.mxu0 0
      %509 = vmatpush1.bf16.msra.mxu0 %v487
      %510 = vmatprep.subr.bf16.mxu0 0
      %511 = vmatpush1.bf16.msra.mxu0 %v488
      %512 = vmatprep.subr.bf16.mxu0 0
      %513 = vmatpush1.bf16.msra.mxu0 %v489
      %514 = vmatprep.subr.bf16.mxu0 0
      %515 = vmatpush1.bf16.msra.mxu0 0
      %516 = vmatprep.subr.bf16.mxu0 0
      %517 = vmatpush1.bf16.msra.mxu0 0
      %518 = vmatprep.subr.bf16.mxu0 0
      %519 = vmatpush1.bf16.msra.mxu0 0
      %520 = vmatprep.subr.bf16.mxu0 0
      %521 = vmatpush1.bf16.msra.mxu0 0
      %522 = vmatprep.subr.bf16.mxu0 0
      %523 = vmatpush1.bf16.msra.mxu0 0
      %524 = vmatprep.subr.bf16.mxu0 0
      %525 = vmatpush1.bf16.msra.mxu0 0
      %526 = vmatprep.subr.bf16.mxu0 0
      %527 = vmatpush1.bf16.msra.mxu0 0
      %528 = vmatprep.subr.bf16.mxu0 0
      %529 = vmatpush1.bf16.msra.mxu0 0
      %530 = vmatprep.mubr.bf16.mxu0 0
      %531 = vmatmul.mubr.bf16.gmra.mrb[0].mxu0 %v443
      %v532 = vpop.f32.mrb[0].mxu0
      %v533 = vadd.f32 %v448, %v532
      %v534 = vpop.f32.mrb[0].mxu0
      %v535 = vpop.f32.mrb[0].mxu0
      %v536 = vadd.f32 %v448, %v535
      %v537 = vpop.f32.mrb[0].mxu0
      %538 = vdwg.mxu0
      %v539 = vmax.f32 %v533, 0.0
      %v540 = vmax.f32 %v536, 0.0
      %v541 = vld [vmem:[#allocation11] sm:$0xf]
      %v542 = vld [vmem:[#allocation11 + $0x4] sm:$0xf]
      %v543 = vld [vmem:[#allocation11 + $0x8] sm:$0xf]
      %v544 = vld [vmem:[#allocation11 + $0xc] sm:$0xf]
      %v545 = vld [vmem:[#allocation11 + $0x10] sm:$0xf]
      %v546 = vld [vmem:[#allocation11 + $0x14] sm:$0xf]
      %v547 = vld [vmem:[#allocation11 + $0x18] sm:$0xf]
      %v548 = vld [vmem:[#allocation11 + $0x1c] sm:$0xf]
      %v549 = vld [vmem:[#allocation11 + $0x20] sm:$0xf]
      %v550 = vld [vmem:[#allocation11 + $0x24] sm:$0xf]
      %v551 = vld [vmem:[#allocation11 + $0x28] sm:$0xf]
      %v552 = vld [vmem:[#allocation11 + $0x2c] sm:$0xf]
      %v553 = vld [vmem:[#allocation11 + $0x30] sm:$0xf]
      %v554 = vld [vmem:[#allocation11 + $0x34] sm:$0xf]
      %v555 = vld [vmem:[#allocation11 + $0x38] sm:$0xf]
      %v556 = vld [vmem:[#allocation11 + $0x3c] sm:$0xf]
      %v557 = vld [vmem:[%s8] sm:$0x1]
      %v558 = vpack.c.bf16 %v540, %v539
      %v560 = vlaneseq
      %v561 = vshrl.u32 %v560, 7
      %v562 = vsub.s32 0, %v561
      %v563 = vrot.slane %v557, %v562
      %v581 = vunpack.c.l.b16 %v541
      %v582 = vunpack.c.l.b16 %v542
      %v583 = vunpack.c.l.b16 %v543
      %v584 = vunpack.c.l.b16 %v544
      %v585 = vunpack.c.l.b16 %v545
      %v586 = vunpack.c.l.b16 %v546
      %v587 = vunpack.c.l.b16 %v547
      %v588 = vunpack.c.l.b16 %v548
      %v589 = vunpack.c.l.b16 %v549
      %v590 = vunpack.c.l.b16 %v550
      %v591 = vunpack.c.l.b16 %v551
      %v592 = vunpack.c.l.b16 %v552
      %v593 = vunpack.c.l.b16 %v553
      %v594 = vunpack.c.l.b16 %v554
      %v595 = vunpack.c.l.b16 %v555
      %v596 = vunpack.c.l.b16 %v556
      %v597 = vpack.c.b16 %v582, %v581
      %v598 = vpack.c.b16 %v584, %v583
      %v599 = vpack.c.b16 %v586, %v585
      %v600 = vpack.c.b16 %v588, %v587
      %v601 = vpack.c.b16 %v590, %v589
      %v602 = vpack.c.b16 %v592, %v591
      %v603 = vpack.c.b16 %v594, %v593
      %v604 = vpack.c.b16 %v596, %v595
      %613 = vmatprep.subr.bf16.mxu0 0
      %614 = vmatpush1.bf16.msra.mxu0 %v597
      %615 = vmatprep.subr.bf16.mxu0 0
      %616 = vmatpush1.bf16.msra.mxu0 %v598
      %617 = vmatprep.subr.bf16.mxu0 0
      %618 = vmatpush1.bf16.msra.mxu0 %v599
      %619 = vmatprep.subr.bf16.mxu0 0
      %620 = vmatpush1.bf16.msra.mxu0 %v600
      %621 = vmatprep.subr.bf16.mxu0 0
      %622 = vmatpush1.bf16.msra.mxu0 %v601
      %623 = vmatprep.subr.bf16.mxu0 0
      %624 = vmatpush1.bf16.msra.mxu0 %v602
      %625 = vmatprep.subr.bf16.mxu0 0
      %626 = vmatpush1.bf16.msra.mxu0 %v603
      %627 = vmatprep.subr.bf16.mxu0 0
      %628 = vmatpush1.bf16.msra.mxu0 %v604
      %629 = vmatprep.subr.bf16.mxu0 0
      %630 = vmatpush1.bf16.msra.mxu0 0
      %631 = vmatprep.subr.bf16.mxu0 0
      %632 = vmatpush1.bf16.msra.mxu0 0
      %633 = vmatprep.subr.bf16.mxu0 0
      %634 = vmatpush1.bf16.msra.mxu0 0
      %635 = vmatprep.subr.bf16.mxu0 0
      %636 = vmatpush1.bf16.msra.mxu0 0
      %637 = vmatprep.subr.bf16.mxu0 0
      %638 = vmatpush1.bf16.msra.mxu0 0
      %639 = vmatprep.subr.bf16.mxu0 0
      %640 = vmatpush1.bf16.msra.mxu0 0
      %641 = vmatprep.subr.bf16.mxu0 0
      %642 = vmatpush1.bf16.msra.mxu0 0
      %643 = vmatprep.subr.bf16.mxu0 0
      %644 = vmatpush1.bf16.msra.mxu0 0
      %645 = vmatprep.mubr.bf16.mxu0 0
      %646 = vmatmul.mubr.bf16.gmra.mrb[0].mxu0 %v558
      %v647 = vpop.f32.mrb[0].mxu0
      %v648 = vadd.f32 %v563, %v647
      %v649 = vpop.f32.mrb[0].mxu0
      %v650 = vpop.f32.mrb[0].mxu0
      %v651 = vadd.f32 %v563, %v650
      %v652 = vpop.f32.mrb[0].mxu0
      %653 = vdwg.mxu0
      %654 = vst [vmem:[#allocation12] sm:$0xff] %v648
      %655 = vst [vmem:[#allocation12 + $0x8] sm:$0xff] %v651
    $region65: #{tpu_custom_call.1} parent=1 // pred_fallthru
      _
    // Predicated region
    $region66: #{tpu_custom_call.1} parent=1 // pred_check
      _
    $region67: #{tpu_custom_call.1} parent=1 // pred_check_branch
      %657 = sbr.rel (0) target = $region69
    $region68: #{tpu_custom_call.1} parent=1 // pred_region
      %s659 = ssub.s32 256, 256
      %660 = vsyncadd [#allocation5], %s659
      %s661 = sshll.u32 [#allocation12], 4
      %s662 = int_to_ptr.vmem [resolvable:$true] %s661
      %667 = dma.vmem_to_hbm [thread:$0]  %s662, 256, %s9, [#allocation5], 128, 128, 8
    $region69: #{tpu_custom_call.1} parent=1 // pred_fallthru
      _
    // Predicated region
    $region70: #{tpu_custom_call.1} parent=1 // pred_check
      _
    $region71: #{tpu_custom_call.1} parent=1 // pred_check_branch
      %669 = sbr.rel (0) target = $region73
    $region72: #{tpu_custom_call.1} parent=1 // pred_region
      %670 = dma.done [#allocation5], 256
    $region73: #{tpu_custom_call.1} parent=1 // pred_fallthru
      _
    %671 = vsyncpa [#allocation4], 1
    %672 = vsyncpa [#allocation7], 1
    %673 = vsyncpa [#allocation10], 1
    %674 = vsyncpa [#allocation5], 1

</llo_original>
